<compile_context>
chip_gen: v7x
topology: tpu7x:2x2x1
jax: 0.10.0
libtpu: 0.0.40
codegen_flags: <defaults>
</compile_context>

<pallas_src>
import jax
import jax.numpy as jnp
from jax import lax
from jax.experimental import pallas as pl
from jax.experimental.pallas import tpu as pltpu

# Problem sizes (small, consistent with the module's forward signature).
B, T = 2, 3          # batch, time steps
C_IN, C_OUT = 4, 8   # conv in/out channels
H, W = 16, 16        # spatial
KH, KW = 3, 3        # conv kernel, padding=1, stride=1 -> same spatial size

K_RAW = KH * (W + 2) * C_IN          # 216 = contraction dim before padding
K_PAD = 256                          # lane-multiple contraction dim (incl. bias lane)
BIAS_LANE = K_RAW                    # slab column holding the constant 1.0
LANES_OUT = W * C_OUT                # 128 = lane-dense output width


def _conv_kernel(x_ref, w_ref, o_ref):
    """Whole TimeDistributed Conv2d as ONE MXU matmul (bias folded into w).

    x_ref: (N*H, K_PAD)      row-tap im2col slab (+ bias lane), f32
    w_ref: (K_PAD, W*C_OUT)  banded weights (+ bias row), f32
    o_ref: (N*H, W*C_OUT)    lane-dense output
    """
    o_ref[...] = jnp.dot(x_ref[...], w_ref[...],
                         preferred_element_type=jnp.float32).astype(o_ref.dtype)


def prepare_conv_params(weight, bias):
    """One-time (weight-load-time) construction of the banded weight matrix.

    weight: (C_OUT, C_IN, KH, KW)  PyTorch Conv2d layout
    bias:   (C_OUT,)
    returns w_full: (K_PAD, W*C_OUT) f32, rows = [kh, p, ci] banded taps,
            row K_RAW = lane-tiled bias, remaining rows zero.
    """
    c_out, c_in, kh, kw = weight.shape
    w_hwio = jnp.transpose(weight, (2, 3, 1, 0)).astype(jnp.float32)      # (KH,KW,C,CO)
    # sel[k, p, wo] = 1 iff p == wo + k  (folds the kw tap into the K axis).
    sel = (jnp.arange(W + 2)[None, :, None] ==
           (jnp.arange(W)[None, None, :] + jnp.arange(kw)[:, None, None])
           ).astype(jnp.float32)                                          # (KW, W+2, W)
    w_band = jnp.einsum('kpw,hkio->hpiwo', sel, w_hwio)                   # (KH,W+2,C,W,CO)
    w_band = w_band.reshape(kh * (W + 2) * c_in, W * c_out)               # (216, 128)
    bias_row = jnp.tile(bias.astype(jnp.float32), W).reshape(1, W * c_out)  # (1, 128)
    pad_rows = K_PAD - (kh * (W + 2) * c_in + 1)
    w_full = jnp.concatenate(
        [w_band, bias_row, jnp.zeros((pad_rows, W * c_out), jnp.float32)], axis=0)
    return w_full                                                          # (256, 128)


@jax.jit
def time_distributed_conv2d(x, w_full):
    """TimeDistributed(Conv2d) forward.

    x:      (B, T, C_IN, H, W)  float32, NCHW images per time step
    w_full: (K_PAD, W*C_OUT)    precomputed banded weights + bias (see above)
    returns (B, T, C_OUT, H, W)
    """
    b, t, c, h, w = x.shape
    n = b * t

    # --- wrapper glue (tiny, static; fuses into the pallas_call inputs) ----
    x_nhwc = jnp.transpose(x.reshape(n, c, h, w), (0, 2, 3, 1))      # (N,H,W,C)
    x_pad = jnp.pad(x_nhwc, ((0, 0), (1, 1), (1, 1), (0, 0)))        # (N,H+2,W+2,C)
    x_lanes = x_pad.reshape(n, h + 2, (w + 2) * c)                   # (N,H+2,72)
    # Row-tap im2col: stack the KH row slabs along the lane axis, append the
    # constant-1 bias lane and zero-pad K to a lane multiple (256).
    slabs = [x_lanes[:, kh:kh + h, :] for kh in range(KH)]           # KH x (N,H,72)
    ones = jnp.ones((n, h, 1), jnp.float32)
    zpad = jnp.zeros((n, h, K_PAD - K_RAW - 1), jnp.float32)
    x_big = jnp.concatenate(slabs + [ones, zpad], axis=-1)           # (N,H,256)
    x_big = x_big.reshape(n * h, K_PAD)                              # (96, 256)

    flops = 2 * (n * h) * K_PAD * LANES_OUT
    bytes_accessed = 4 * (n * h * K_PAD + K_PAD * LANES_OUT + n * h * LANES_OUT)

    out2d = pl.pallas_call(
        _conv_kernel,
        out_shape=jax.ShapeDtypeStruct((n * h, LANES_OUT), jnp.float32),
        # No grid: single invocation, whole arrays as VMEM-resident blocks.
        in_specs=[
            pl.BlockSpec(memory_space=pltpu.MemorySpace.VMEM),
            pl.BlockSpec(memory_space=pltpu.MemorySpace.VMEM),
        ],
        out_specs=pl.BlockSpec(memory_space=pltpu.MemorySpace.VMEM),
        compiler_params=pltpu.CompilerParams(
            allow_input_fusion=[True, True]),
        cost_estimate=pl.CostEstimate(
            flops=flops, bytes_accessed=bytes_accessed, transcendentals=0),
    )(x_big, w_full)

    # Back to PyTorch conventions: (N*H, W*C_OUT) -> NHWC -> NCHW -> (B, T, ...).
    out_nhwc = out2d.reshape(n, h, w, C_OUT)
    out_nchw = jnp.transpose(out_nhwc, (0, 3, 1, 2))                  # (N,C_OUT,H,W)
    return out_nchw.reshape(b, t, C_OUT, h, w)


def _reference(x, weight, bias):
    """Pure-JAX reference of TimeDistributed(Conv2d) for validation."""
    b, t, c, h, w = x.shape
    x_m = x.reshape(b * t, c, h, w)
    out = lax.conv_general_dilated(
        x_m, weight, window_strides=(1, 1), padding=((1, 1), (1, 1)),
        dimension_numbers=("NCHW", "OIHW", "NCHW"))
    out = out + bias.reshape(1, -1, 1, 1)
    return out.reshape(b, t, weight.shape[0], h, w)


if __name__ == "__main__":
    key = jax.random.PRNGKey(0)
    k_x, k_w, k_b = jax.random.split(key, 3)

    # Deterministic synthetic inputs (shapes from Conv2d(C_IN, C_OUT, 3, padding=1)).
    x = jax.random.normal(k_x, (B, T, C_IN, H, W), dtype=jnp.float32)
    weight = 0.1 * jax.random.normal(k_w, (C_OUT, C_IN, KH, KW), dtype=jnp.float32)
    bias = 0.01 * jax.random.normal(k_b, (C_OUT,), dtype=jnp.float32)

    # One-time weight prep (outside the per-call path), then the kerneled forward.
    w_full = jax.block_until_ready(prepare_conv_params(weight, bias))
    out = jax.block_until_ready(time_distributed_conv2d(x, w_full))

    ref = _reference(x, weight, bias)
    assert out.shape == (B, T, C_OUT, H, W), out.shape
    assert jnp.allclose(out, ref, atol=1e-4, rtol=1e-4), "mismatch vs reference"

    print("KERNEL_OK")
</pallas_src>

<mosaic_0001>
module attributes {stable_mosaic.version = 11 : i64} {
  func.func @_conv_kernel(%arg0: memref<96x256xf32, #tpu.memory_space<vmem>>, %arg1: memref<256x128xf32, #tpu.memory_space<vmem>>, %arg2: memref<96x128xf32, #tpu.memory_space<vmem>>) attributes {dimension_semantics = [], scalar_prefetch = 0 : i64, scratch_operands = 0 : i64, tpu.core_type = #tpu.core_type<tc>} {
    %c0 = arith.constant 0 : index
    %c0_0 = arith.constant 0 : index
    %0 = vector.load %arg0[%c0, %c0_0] : memref<96x256xf32, #tpu.memory_space<vmem>>, vector<96x256xf32>
    %c0_1 = arith.constant 0 : index
    %c0_2 = arith.constant 0 : index
    %1 = vector.load %arg1[%c0_1, %c0_2] : memref<256x128xf32, #tpu.memory_space<vmem>>, vector<256x128xf32>
    %cst = arith.constant dense<0.000000e+00> : vector<96x128xf32>
    %2 = tpu.matmul %0, %1, %cst {dimension_numbers = #tpu.dot_dimension_numbers<[1], [0], [0], [1], [0, 0, 1, 1], [], []>} : vector<96x256xf32>, vector<256x128xf32>, vector<96x128xf32> -> vector<96x128xf32>
    %c0_3 = arith.constant 0 : index
    %c0_4 = arith.constant 0 : index
    %3 = vector.load %arg2[%c0_3, %c0_4] : memref<96x128xf32, #tpu.memory_space<vmem>>, vector<96x128xf32>
    tpu.vector_store %arg2[%c0_3, %c0_4], %2 {strides = array<i32>} : memref<96x128xf32, #tpu.memory_space<vmem>>, vector<96x128xf32>,
    return
  }
}

</mosaic_0001>

<llo_original>
// kernel: time_distributed_conv2d.1
$region0: #{time_distributed_conv2d.1}
  #allocation0 [shape = 'u32[]', space=smem, size = 0x4, offset = 0x4, fixed_abs, tag = 'smem constant byte address 0x4 - core index']
  #allocation1 [shape = 'u32[144,128]{1,0:T(1,128)}', space=vmem, size = 0x12000, scoped, tag = 'internal scratch']
  %s0 = inlined_call_operand.vmem [shape: f32[96,256], index: 0, kind: input, shape index: {}]
  %s1 = inlined_call_operand.vmem [shape: f32[256,128], index: 1, kind: input, shape index: {}]
  %s2 = inlined_call_operand.vmem [shape: f32[96,128], index: 2, kind: output, shape index: {}]
  %s3 = sld [smem:[#allocation0]]
  $region18: #{time_distributed_conv2d.1} parent=0
    _
  %s5 = ssub.s32 1, %s3
  %s6 = scalar_select 0, %s5, %s3
  // Predicated region
  $region2: #{time_distributed_conv2d.1} parent=0 // pred_check
    _
  $region3: #{time_distributed_conv2d.1} parent=0 // pred_check_branch
    %8 = sbr.rel (0) target = $region5
  $region4: #{time_distributed_conv2d.1} parent=0 // pred_region
    _
  $region5: #{time_distributed_conv2d.1} parent=0 // pred_fallthru
    _
  // Predicated region
  $region6: #{time_distributed_conv2d.1} parent=0 // pred_check
    _
  $region7: #{time_distributed_conv2d.1} parent=0 // pred_check_branch
    %10 = sbr.rel (0) target = $region9
  $region8: #{time_distributed_conv2d.1} parent=0 // pred_region
    _
  $region9: #{time_distributed_conv2d.1} parent=0 // pred_fallthru
    _
  %v11 = vld [vmem:[%s0] sm:$0xff]
  %v12 = vld [vmem:[%s0 + $0x8] sm:$0xff]
  %v13 = vld [vmem:[%s0 + $0x10] sm:$0xff]
  %v14 = vld [vmem:[%s0 + $0x18] sm:$0xff]
  %v15 = vld [vmem:[%s0 + $0x20] sm:$0xff]
  %v16 = vld [vmem:[%s0 + $0x28] sm:$0xff]
  %v17 = vld [vmem:[%s0 + $0x30] sm:$0xff]
  %v18 = vld [vmem:[%s0 + $0x38] sm:$0xff]
  %v19 = vld [vmem:[%s0 + $0x40] sm:$0xff]
  %v20 = vld [vmem:[%s0 + $0x48] sm:$0xff]
  %v21 = vld [vmem:[%s0 + $0x50] sm:$0xff]
  %v22 = vld [vmem:[%s0 + $0x58] sm:$0xff]
  %v23 = vld [vmem:[%s0 + $0x60] sm:$0xff]
  %v24 = vld [vmem:[%s0 + $0x68] sm:$0xff]
  %v25 = vld [vmem:[%s0 + $0x70] sm:$0xff]
  %v26 = vld [vmem:[%s0 + $0x78] sm:$0xff]
  %v27 = vld [vmem:[%s0 + $0x80] sm:$0xff]
  %v28 = vld [vmem:[%s0 + $0x88] sm:$0xff]
  %v29 = vld [vmem:[%s0 + $0x90] sm:$0xff]
  %v30 = vld [vmem:[%s0 + $0x98] sm:$0xff]
  %v31 = vld [vmem:[%s0 + $0xa0] sm:$0xff]
  %v32 = vld [vmem:[%s0 + $0xa8] sm:$0xff]
  %v33 = vld [vmem:[%s0 + $0xb0] sm:$0xff]
  %v34 = vld [vmem:[%s0 + $0xb8] sm:$0xff]
  %v35 = vld [vmem:[%s1] sm:$0xff]
  %v36 = vld [vmem:[%s1 + $0x8] sm:$0xff]
  %v37 = vld [vmem:[%s1 + $0x10] sm:$0xff]
  %v38 = vld [vmem:[%s1 + $0x18] sm:$0xff]
  %v39 = vld [vmem:[%s1 + $0x20] sm:$0xff]
  %v40 = vld [vmem:[%s1 + $0x28] sm:$0xff]
  %v41 = vld [vmem:[%s1 + $0x30] sm:$0xff]
  %v42 = vld [vmem:[%s1 + $0x38] sm:$0xff]
  %v43 = vld [vmem:[%s1 + $0x40] sm:$0xff]
  %v44 = vld [vmem:[%s1 + $0x48] sm:$0xff]
  %v45 = vld [vmem:[%s1 + $0x50] sm:$0xff]
  %v46 = vld [vmem:[%s1 + $0x58] sm:$0xff]
  %v47 = vld [vmem:[%s1 + $0x60] sm:$0xff]
  %v48 = vld [vmem:[%s1 + $0x68] sm:$0xff]
  %v49 = vld [vmem:[%s1 + $0x70] sm:$0xff]
  %v50 = vld [vmem:[%s1 + $0x78] sm:$0xff]
  %v51 = vld [vmem:[%s1 + $0x80] sm:$0xff]
  %v52 = vld [vmem:[%s1 + $0x88] sm:$0xff]
  %v53 = vld [vmem:[%s1 + $0x90] sm:$0xff]
  %v54 = vld [vmem:[%s1 + $0x98] sm:$0xff]
  %v55 = vld [vmem:[%s1 + $0xa0] sm:$0xff]
  %v56 = vld [vmem:[%s1 + $0xa8] sm:$0xff]
  %v57 = vld [vmem:[%s1 + $0xb0] sm:$0xff]
  %v58 = vld [vmem:[%s1 + $0xb8] sm:$0xff]
  %v59 = vld [vmem:[%s1 + $0xc0] sm:$0xff]
  %v60 = vld [vmem:[%s1 + $0xc8] sm:$0xff]
  %v61 = vld [vmem:[%s1 + $0xd0] sm:$0xff]
  %v62 = vld [vmem:[%s1 + $0xd8] sm:$0xff]
  %v63 = vld [vmem:[%s1 + $0xe0] sm:$0xff]
  %v64 = vld [vmem:[%s1 + $0xe8] sm:$0xff]
  %v65 = vld [vmem:[%s1 + $0xf0] sm:$0xff]
  %v66 = vld [vmem:[%s1 + $0xf8] sm:$0xff]
  %67 = vmatprep.subr.mxu0 0.0
  %68 = vmatpush1.msra.mxu0 %v35
  %69 = vmatprep.subr.mxu0 0.0
  %70 = vmatpush1.msra.mxu0 %v36
  %71 = vmatprep.subr.mxu0 0.0
  %72 = vmatpush1.msra.mxu0 %v37
  %73 = vmatprep.subr.mxu0 0.0
  %74 = vmatpush1.msra.mxu0 %v38
  %75 = vmatprep.subr.mxu0 0.0
  %76 = vmatpush1.msra.mxu0 %v39
  %77 = vmatprep.subr.mxu0 0.0
  %78 = vmatpush1.msra.mxu0 %v40
  %79 = vmatprep.subr.mxu0 0.0
  %80 = vmatpush1.msra.mxu0 %v41
  %81 = vmatprep.subr.mxu0 0.0
  %82 = vmatpush1.msra.mxu0 %v42
  %83 = vmatprep.subr.mxu0 0.0
  %84 = vmatpush1.msra.mxu0 %v43
  %85 = vmatprep.subr.mxu0 0.0
  %86 = vmatpush1.msra.mxu0 %v44
  %87 = vmatprep.subr.mxu0 0.0
  %88 = vmatpush1.msra.mxu0 %v45
  %89 = vmatprep.subr.mxu0 0.0
  %90 = vmatpush1.msra.mxu0 %v46
  %91 = vmatprep.subr.mxu0 0.0
  %92 = vmatpush1.msra.mxu0 %v47
  %93 = vmatprep.subr.mxu0 0.0
  %94 = vmatpush1.msra.mxu0 %v48
  %95 = vmatprep.subr.mxu0 0.0
  %96 = vmatpush1.msra.mxu0 %v49
  %97 = vmatprep.subr.mxu0 0.0
  %98 = vmatpush1.msra.mxu0 %v50
  %99 = vmatprep.subr.mxu0 0.0
  %100 = vmatpush1.msra.mxu0 %v51
  %101 = vmatprep.subr.mxu0 0.0
  %102 = vmatpush1.msra.mxu0 %v52
  %103 = vmatprep.subr.mxu0 0.0
  %104 = vmatpush1.msra.mxu0 %v53
  %105 = vmatprep.subr.mxu0 0.0
  %106 = vmatpush1.msra.mxu0 %v54
  %107 = vmatprep.subr.mxu0 0.0
  %108 = vmatpush1.msra.mxu0 %v55
  %109 = vmatprep.subr.mxu0 0.0
  %110 = vmatpush1.msra.mxu0 %v56
  %111 = vmatprep.subr.mxu0 0.0
  %112 = vmatpush1.msra.mxu0 %v57
  %113 = vmatprep.subr.mxu0 0.0
  %114 = vmatpush1.msra.mxu0 %v58
  %115 = vmatprep.subr.mxu0 0.0
  %116 = vmatpush1.msra.mxu0 %v59
  %117 = vmatprep.subr.mxu0 0.0
  %118 = vmatpush1.msra.mxu0 %v60
  %119 = vmatprep.subr.mxu0 0.0
  %120 = vmatpush1.msra.mxu0 %v61
  %121 = vmatprep.subr.mxu0 0.0
  %122 = vmatpush1.msra.mxu0 %v62
  %123 = vmatprep.subr.mxu0 0.0
  %124 = vmatpush1.msra.mxu0 %v63
  %125 = vmatprep.subr.mxu0 0.0
  %126 = vmatpush1.msra.mxu0 %v64
  %127 = vmatprep.subr.mxu0 0.0
  %128 = vmatpush1.msra.mxu0 %v65
  %129 = vmatprep.subr.mxu0 0.0
  %130 = vmatpush1.msra.mxu0 %v66
  %131 = vmatprep.mubr.f32.mxu0 %v12
  %132 = vmatmul.mubr.f32.gmra.mrb[0].mxu0 %v11
  %v133 = vpop.f32.mrb[0].mxu0
  %v134 = vadd.f32 0.0, %v133
  %v135 = vpop.f32.mrb[0].mxu0
  %136 = vmatprep.mubr.f32.mxu0 %v14
  %137 = vmatmul.mubr.f32.gmra.mrb[0].mxu0 %v13
  %v138 = vpop.f32.mrb[0].mxu0
  %v139 = vadd.f32 0.0, %v138
  %v140 = vpop.f32.mrb[0].mxu0
  %141 = vmatprep.mubr.f32.mxu0 %v16
  %142 = vmatmul.mubr.f32.gmra.mrb[0].mxu0 %v15
  %v143 = vpop.f32.mrb[0].mxu0
  %v144 = vadd.f32 0.0, %v143
  %v145 = vpop.f32.mrb[0].mxu0
  %146 = vmatprep.mubr.f32.mxu0 %v18
  %147 = vmatmul.mubr.f32.gmra.mrb[0].mxu0 %v17
  %v148 = vpop.f32.mrb[0].mxu0
  %v149 = vadd.f32 0.0, %v148
  %v150 = vpop.f32.mrb[0].mxu0
  %151 = vmatprep.mubr.f32.mxu0 %v20
  %152 = vmatmul.mubr.f32.gmra.mrb[0].mxu0 %v19
  %v153 = vpop.f32.mrb[0].mxu0
  %v154 = vadd.f32 0.0, %v153
  %v155 = vpop.f32.mrb[0].mxu0
  %156 = vmatprep.mubr.f32.mxu0 %v22
  %157 = vmatmul.mubr.f32.gmra.mrb[0].mxu0 %v21
  %v158 = vpop.f32.mrb[0].mxu0
  %v159 = vadd.f32 0.0, %v158
  %v160 = vpop.f32.mrb[0].mxu0
  %161 = vmatprep.mubr.f32.mxu0 %v24
  %162 = vmatmul.mubr.f32.gmra.mrb[0].mxu0 %v23
  %v163 = vpop.f32.mrb[0].mxu0
  %v164 = vadd.f32 0.0, %v163
  %v165 = vpop.f32.mrb[0].mxu0
  %166 = vmatprep.mubr.f32.mxu0 %v26
  %167 = vmatmul.mubr.f32.gmra.mrb[0].mxu0 %v25
  %v168 = vpop.f32.mrb[0].mxu0
  %v169 = vadd.f32 0.0, %v168
  %v170 = vpop.f32.mrb[0].mxu0
  %171 = vmatprep.mubr.f32.mxu0 %v28
  %172 = vmatmul.mubr.f32.gmra.mrb[0].mxu0 %v27
  %v173 = vpop.f32.mrb[0].mxu0
  %v174 = vadd.f32 0.0, %v173
  %v175 = vpop.f32.mrb[0].mxu0
  %176 = vmatprep.mubr.f32.mxu0 %v30
  %177 = vmatmul.mubr.f32.gmra.mrb[0].mxu0 %v29
  %v178 = vpop.f32.mrb[0].mxu0
  %v179 = vadd.f32 0.0, %v178
  %v180 = vpop.f32.mrb[0].mxu0
  %181 = vmatprep.mubr.f32.mxu0 %v32
  %182 = vmatmul.mubr.f32.gmra.mrb[0].mxu0 %v31
  %v183 = vpop.f32.mrb[0].mxu0
  %v184 = vadd.f32 0.0, %v183
  %v185 = vpop.f32.mrb[0].mxu0
  %186 = vmatprep.mubr.f32.mxu0 %v34
  %187 = vmatmul.mubr.f32.gmra.mrb[0].mxu0 %v33
  %v188 = vpop.f32.mrb[0].mxu0
  %v189 = vadd.f32 0.0, %v188
  %v190 = vpop.f32.mrb[0].mxu0
  %191 = vdwg.mxu0
  %192 = vst [vmem:[%s2] sm:$0xff] %v134
  %193 = vst [vmem:[%s2 + $0x8] sm:$0xff] %v139
  %194 = vst [vmem:[%s2 + $0x10] sm:$0xff] %v144
  %195 = vst [vmem:[%s2 + $0x18] sm:$0xff] %v149
  %196 = vst [vmem:[%s2 + $0x20] sm:$0xff] %v154
  %197 = vst [vmem:[%s2 + $0x28] sm:$0xff] %v159
  %198 = vst [vmem:[%s2 + $0x30] sm:$0xff] %v164
  %199 = vst [vmem:[%s2 + $0x38] sm:$0xff] %v169
  %200 = vst [vmem:[%s2 + $0x40] sm:$0xff] %v174
  %201 = vst [vmem:[%s2 + $0x48] sm:$0xff] %v179
  %202 = vst [vmem:[%s2 + $0x50] sm:$0xff] %v184
  %203 = vst [vmem:[%s2 + $0x58] sm:$0xff] %v189
  // Predicated region
  $region10: #{time_distributed_conv2d.1} parent=0 // pred_check
    _
  $region11: #{time_distributed_conv2d.1} parent=0 // pred_check_branch
    %205 = sbr.rel (0) target = $region13
  $region12: #{time_distributed_conv2d.1} parent=0 // pred_region
    _
  $region13: #{time_distributed_conv2d.1} parent=0 // pred_fallthru
    _
  // Predicated region
  $region14: #{time_distributed_conv2d.1} parent=0 // pred_check
    _
  $region15: #{time_distributed_conv2d.1} parent=0 // pred_check_branch
    %207 = sbr.rel (0) target = $region17
  $region16: #{time_distributed_conv2d.1} parent=0 // pred_region
    _
  $region17: #{time_distributed_conv2d.1} parent=0 // pred_fallthru
    _

</llo_original>
